<compile_context>
chip_gen: v5e
topology: v5e:2x2
jax: 0.10.0
libtpu: 0.0.40
codegen_flags: <defaults>
</compile_context>

<pallas_src>
import functools
import math

import jax
import jax.numpy as jnp
import numpy as np
from jax import lax
from jax.experimental import pallas as pl
from jax.experimental.pallas import tpu as pltpu

NEG_INF = -1000000000.0


@functools.lru_cache(maxsize=None)
def _vmem_limit_bytes():
    """Per-generation VMEM limit: ~96 MiB on 128-MiB parts, 48 MiB on v7x."""
    limit = 48 << 20  # safe everywhere (v7x physical is 64 MiB)
    try:
        cap = getattr(pltpu.get_tpu_info(), "vmem_capacity_bytes", None)
        if cap:
            limit = int(max(32 << 20, min(cap - (16 << 20), 96 << 20)))
    except Exception:
        pass
    return limit


def _pick_tile(dim, cap, mult):
    """Largest divisor of `dim` that is <= cap and a multiple of `mult`.

    Falls back to the full dim (single block) only if no such divisor exists.
    """
    if dim <= cap:
        return dim
    d = cap - (cap % mult)
    while d >= mult:
        if dim % d == 0:
            return d
        d -= mult
    return dim


# ---------------------------------------------------------------------------
# Kernel 1: tiled matmul + bias (fused QKV projection and output projection)
# ---------------------------------------------------------------------------
def _linear_kernel(x_ref, w_ref, b_ref, o_ref, acc_ref):
    # x: (tm, tk), w: (tk, tn), b: (1, tn) -> o: (tm, tn); k = reduction axis.
    @pl.when(pl.program_id(2) == 0)
    def _init():
        acc_ref[...] = jnp.zeros_like(acc_ref)

    # bf16 MXU operands, f32 accumulation.
    acc_ref[...] += jnp.dot(
        x_ref[...].astype(jnp.bfloat16),
        w_ref[...].astype(jnp.bfloat16),
        preferred_element_type=jnp.float32,
    )

    @pl.when(pl.program_id(2) == pl.num_programs(2) - 1)
    def _finalize():
        o_ref[...] = (acc_ref[...] + b_ref[...].astype(jnp.float32)).astype(o_ref.dtype)


def pallas_linear(x2d, w, b, *, tm_max=512, tn_max=512, tk_max=1024):
    """y = x2d @ w + b with BlockSpec-pipelined tiling (double-buffered DMA)."""
    M, K = x2d.shape
    Kw, N = w.shape
    assert K == Kw, (K, Kw)

    tm = _pick_tile(M, tm_max, 8)     # sublane-friendly
    tn = _pick_tile(N, tn_max, 128)   # lane-friendly
    tk = _pick_tile(K, tk_max, 128)   # lanes for x tile, sublanes(8)-ok for w tile

    grid = (M // tm, N // tn, K // tk)
    isz = x2d.dtype.itemsize
    flops = 2 * M * N * K
    bytes_accessed = isz * (M * K + K * N + M * N + N)

    return pl.pallas_call(
        _linear_kernel,
        out_shape=jax.ShapeDtypeStruct((M, N), x2d.dtype),
        grid=grid,
        in_specs=[
            pl.BlockSpec((tm, tk), lambda i, j, k: (i, k)),
            pl.BlockSpec((tk, tn), lambda i, j, k: (k, j)),
            pl.BlockSpec((1, tn), lambda i, j, k: (0, j)),
        ],
        out_specs=pl.BlockSpec((tm, tn), lambda i, j, k: (i, j)),
        scratch_shapes=[pltpu.VMEM((tm, tn), jnp.float32)],
        compiler_params=pltpu.CompilerParams(
            dimension_semantics=("parallel", "parallel", "arbitrary"),
            vmem_limit_bytes=_vmem_limit_bytes(),
        ),
        cost_estimate=pl.CostEstimate(
            flops=flops, transcendentals=0, bytes_accessed=bytes_accessed
        ),
    )(x2d, w, b.reshape(1, N))


# ---------------------------------------------------------------------------
# Kernel 2: attention core.  Grid (B, H, Tq-tiles); per step one head's query
# stripe against the full keys/values of that head:
#     scores = (Q * 1/sqrt(dk)) K^T       (NT dot_general, bf16 -> f32)
#     mask   = triu(ones, diagonal=0)     (col >= row, matches the module)
#     softermax = exp(s) * approx_recip(sum(exp(s)) + 1e-9)   (f32)
#     av     = weights @ V                (bf16 -> f32)
# Outputs: av (B, H, T, dv), weights (B, H, T, T).
# ---------------------------------------------------------------------------
def _attention_kernel(q_ref, k_ref, v_ref, av_ref, w_ref, *, d_key, q_tile):
    # q_ref: (1,1,Tq,dk)  k_ref: (1,1,T,dk)  v_ref: (1,1,T,dv)
    # av_ref: (1,1,Tq,dv) w_ref: (1,1,Tq,T)
    Tq = q_ref.shape[2]
    T = k_ref.shape[2]
    inv_sqrt_dk = 1.0 / float(math.sqrt(d_key))

    # Fold the 1/sqrt(dk) scale into Q (Tq x dk multiply), then feed the MXU
    # with bf16 operands (f32 accumulation).
    q = (q_ref[0, 0].astype(jnp.float32) * inv_sqrt_dk).astype(jnp.bfloat16)
    k = k_ref[0, 0].astype(jnp.bfloat16)
    s = lax.dot_general(
        q, k, (((1,), (1,)), ((), ())), preferred_element_type=jnp.float32
    )  # (Tq, T)

    # Reference-module mask: torch.triu(ones, diagonal=0) -> mask where col >= row.
    row = pl.program_id(2) * q_tile + lax.broadcasted_iota(jnp.int32, (Tq, T), 0)
    col = lax.broadcasted_iota(jnp.int32, (Tq, T), 1)
    s = jnp.where(col >= row, NEG_INF, s)

    # softermax (no max-subtraction, matches the reference); kept in f32.
    e = jnp.exp(s)
    inv = pl.reciprocal(jnp.sum(e, axis=-1, keepdims=True) + 1e-09, approx=True)
    wgt = e * inv

    w_ref[0, 0] = wgt.astype(w_ref.dtype)
    av = jnp.dot(
        wgt.astype(jnp.bfloat16),
        v_ref[0, 0].astype(jnp.bfloat16),
        preferred_element_type=jnp.float32,
    )
    av_ref[0, 0] = av.astype(av_ref.dtype)


def pallas_attention_core(q, k, v, *, q_tile_max=256, weights_dtype=None):
    """q, k, v: (B, H, T, d) head-major. Returns (av (B,H,T,dv), weights (B,H,T,T))."""
    B, H, T, dk = q.shape
    dv = v.shape[-1]
    wd = jnp.dtype(weights_dtype) if weights_dtype is not None else q.dtype

    Tq = _pick_tile(T, q_tile_max, 8)
    grid = (B, H, T // Tq)

    kernel = functools.partial(_attention_kernel, d_key=dk, q_tile=Tq)

    flops = 2 * B * H * T * T * (dk + dv)
    transcendentals = B * H * T * T + B * H * T
    bytes_accessed = (
        q.dtype.itemsize * B * H * T * (2 * dk + dv)  # q, k, v in
        + q.dtype.itemsize * B * H * T * dv           # av out
        + jnp.dtype(wd).itemsize * B * H * T * T      # weights out
    )

    av, weights = pl.pallas_call(
        kernel,
        out_shape=(
            jax.ShapeDtypeStruct((B, H, T, dv), q.dtype),
            jax.ShapeDtypeStruct((B, H, T, T), wd),
        ),
        grid=grid,
        in_specs=[
            pl.BlockSpec((1, 1, Tq, dk), lambda b, h, qi: (b, h, qi, 0)),
            pl.BlockSpec((1, 1, T, dk), lambda b, h, qi: (b, h, 0, 0)),
            pl.BlockSpec((1, 1, T, dv), lambda b, h, qi: (b, h, 0, 0)),
        ],
        out_specs=(
            pl.BlockSpec((1, 1, Tq, dv), lambda b, h, qi: (b, h, qi, 0)),
            pl.BlockSpec((1, 1, Tq, T), lambda b, h, qi: (b, h, qi, 0)),
        ),
        compiler_params=pltpu.CompilerParams(
            dimension_semantics=("parallel", "parallel", "arbitrary"),
            vmem_limit_bytes=_vmem_limit_bytes(),
        ),
        cost_estimate=pl.CostEstimate(
            flops=flops,
            transcendentals=transcendentals,
            bytes_accessed=bytes_accessed,
        ),
    )(q, k, v)
    return av, weights


# ---------------------------------------------------------------------------
# Module wrapper
# ---------------------------------------------------------------------------
def prepare_params(params):
    """Hoist the Q/K/V weight & bias fusion out of the per-forward path."""
    return {
        "w_qkv": jnp.concatenate([params["wq"], params["wk"], params["wv"]], axis=1),
        "b_qkv": jnp.concatenate([params["bq"], params["bk"], params["bv"]], axis=0),
        "wo": params["wo"],
        "bo": params["bo"],
    }


def multi_head_attention(x, fused_params, num_heads, d_key, d_value):
    """Returns (output (B,T,E), attention_weights (B,H,T,T)). padding_mask=None path."""
    B, T, E = x.shape
    x2d = x.reshape(B * T, E)

    # Fused QKV projection: one kernel launch, x read from HBM once.
    qkv = pallas_linear(x2d, fused_params["w_qkv"], fused_params["b_qkv"])
    qkv = qkv.reshape(B, T, -1)

    # split_heads: layout plumbing handled by XLA outside the kernels.
    hk = num_heads * d_key
    q = qkv[..., :hk].reshape(B, T, num_heads, d_key).transpose(0, 2, 1, 3)
    k = qkv[..., hk:2 * hk].reshape(B, T, num_heads, d_key).transpose(0, 2, 1, 3)
    v = qkv[..., 2 * hk:].reshape(B, T, num_heads, d_value).transpose(0, 2, 1, 3)

    av, weights = pallas_attention_core(q, k, v)

    # concat_heads, then output projection.
    av2d = av.transpose(0, 2, 1, 3).reshape(B * T, num_heads * d_value)
    out = pallas_linear(av2d, fused_params["wo"], fused_params["bo"]).reshape(B, T, E)
    return out, weights


# ---------------------------------------------------------------------------
# Pure-JAX reference (mirrors the PyTorch forward exactly) for sanity check
# ---------------------------------------------------------------------------
def _split_heads(t, num_heads, num_features):
    B, T, _ = t.shape
    return t.reshape(B, T, num_heads, num_features).transpose(0, 2, 1, 3)


def _concat_heads(t):
    B, H, T, D = t.shape
    return t.transpose(0, 2, 1, 3).reshape(B, T, H * D)


def reference_mha(x, params, num_heads, d_key, d_value):
    B, T, E = x.shape
    q = x @ params["wq"] + params["bq"]
    k = x @ params["wk"] + params["bk"]
    v = x @ params["wv"] + params["bv"]
    qh = _split_heads(q, num_heads, d_key)
    kh = _split_heads(k, num_heads, d_key)
    vh = _split_heads(v, num_heads, d_value)
    scores = jnp.einsum("bhqd,bhkd->bhqk", qh, kh) / jnp.sqrt(
        jnp.asarray(d_key, jnp.float32)
    )
    mask = jnp.triu(jnp.ones((T, T), dtype=bool))[None, None]
    scores = jnp.where(mask, NEG_INF, scores)
    e = jnp.exp(scores)
    weights = e / (jnp.sum(e, axis=-1, keepdims=True) + 1e-09)
    av = jnp.einsum("bhqk,bhkd->bhqd", weights, vh)
    out = _concat_heads(av) @ params["wo"] + params["bo"]
    return out, weights


if __name__ == "__main__":
    # Small shapes consistent with the module's forward.
    B, T, E = 2, 8, 32
    num_heads, d_key, d_value = 4, 16, 16

    key = jax.random.PRNGKey(0)
    ks = jax.random.split(key, 9)
    scale = 0.05
    params = {
        "wq": jax.random.normal(ks[0], (E, num_heads * d_key), jnp.float32) * scale,
        "bq": jax.random.normal(ks[1], (num_heads * d_key,), jnp.float32) * scale,
        "wk": jax.random.normal(ks[2], (E, num_heads * d_key), jnp.float32) * scale,
        "bk": jax.random.normal(ks[3], (num_heads * d_key,), jnp.float32) * scale,
        "wv": jax.random.normal(ks[4], (E, num_heads * d_value), jnp.float32) * scale,
        "bv": jax.random.normal(ks[5], (num_heads * d_value,), jnp.float32) * scale,
        "wo": jax.random.normal(ks[6], (num_heads * d_value, E), jnp.float32) * scale,
        "bo": jax.random.normal(ks[7], (E,), jnp.float32) * scale,
    }
    x = jax.random.normal(ks[8], (B, T, E), jnp.float32)

    fused = prepare_params(params)
    out, attn_w = multi_head_attention(x, fused, num_heads, d_key, d_value)
    out = jax.block_until_ready(out)
    attn_w = jax.block_until_ready(attn_w)

    ref_out, ref_w = reference_mha(x, params, num_heads, d_key, d_value)
    # MXU operands run in bf16 (per perf review) and the softermax denominator
    # uses an approximate reciprocal, so compare at bf16-appropriate tolerance.
    np.testing.assert_allclose(np.asarray(out), np.asarray(ref_out), rtol=2e-2, atol=2e-2)
    np.testing.assert_allclose(np.asarray(attn_w), np.asarray(ref_w), rtol=2e-2, atol=2e-2)
    assert out.shape == (B, T, E)
    assert attn_w.shape == (B, num_heads, T, T)

    print("KERNEL_OK")
</pallas_src>

<mosaic_0001>
module attributes {stable_mosaic.version = 11 : i64} {
  func.func @_linear_kernel(%arg0: i32, %arg1: i32, %arg2: i32, %arg3: memref<16x32xf32, #tpu.memory_space<vmem>>, %arg4: memref<32x192xf32, #tpu.memory_space<vmem>>, %arg5: memref<1x192xf32, #tpu.memory_space<vmem>>, %arg6: memref<16x192xf32, #tpu.memory_space<vmem>>, %arg7: memref<16x192xf32, #tpu.memory_space<vmem>>) attributes {dimension_semantics = [#tpu.dimension_semantics<parallel>, #tpu.dimension_semantics<parallel>, #tpu.dimension_semantics<arbitrary>], iteration_bounds = array<i64: 1, 1, 1>, scalar_prefetch = 0 : i64, scratch_operands = 1 : i64, tpu.core_type = #tpu.core_type<tc>, window_params = [{transform_indices = @transform_0, window_bounds = array<i64: 16, 32>}, {transform_indices = @transform_1, window_bounds = array<i64: 32, 192>}, {transform_indices = @transform_2, window_bounds = array<i64: 1, 192>}, {transform_indices = @transform_3, window_bounds = array<i64: 16, 192>}]} {
    %c0_i32 = arith.constant 0 : i32
    %0 = arith.cmpi eq, %arg2, %c0_i32 : i32
    %1 = arith.extui %0 : i1 to i32
    %c0_i32_0 = arith.constant 0 : i32
    %2 = arith.cmpi ne, %1, %c0_i32_0 : i32
    scf.if %2 {
      %cst_10 = arith.constant 0.000000e+00 : f32
      %14 = vector.broadcast %cst_10 : f32 to vector<16x192xf32>
      %c0_11 = arith.constant 0 : index
      %c0_12 = arith.constant 0 : index
      %15 = vector.load %arg7[%c0_11, %c0_12] : memref<16x192xf32, #tpu.memory_space<vmem>>, vector<16x192xf32>
      tpu.vector_store %arg7[%c0_11, %c0_12], %14 {strides = array<i32>} : memref<16x192xf32, #tpu.memory_space<vmem>>, vector<16x192xf32>,
    } else {
    }
    %c0 = arith.constant 0 : index
    %c0_1 = arith.constant 0 : index
    %3 = vector.load %arg7[%c0, %c0_1] : memref<16x192xf32, #tpu.memory_space<vmem>>, vector<16x192xf32>
    %c0_2 = arith.constant 0 : index
    %c0_3 = arith.constant 0 : index
    %4 = vector.load %arg3[%c0_2, %c0_3] : memref<16x32xf32, #tpu.memory_space<vmem>>, vector<16x32xf32>
    %5 = arith.truncf %4 : vector<16x32xf32> to vector<16x32xbf16>
    %c0_4 = arith.constant 0 : index
    %c0_5 = arith.constant 0 : index
    %6 = vector.load %arg4[%c0_4, %c0_5] : memref<32x192xf32, #tpu.memory_space<vmem>>, vector<32x192xf32>
    %7 = arith.truncf %6 : vector<32x192xf32> to vector<32x192xbf16>
    %cst = arith.constant dense<0.000000e+00> : vector<16x192xf32>
    %8 = tpu.matmul %5, %7, %cst {dimension_numbers = #tpu.dot_dimension_numbers<[1], [0], [0], [1], [0, 0, 1, 1], [], []>} : vector<16x32xbf16>, vector<32x192xbf16>, vector<16x192xf32> -> vector<16x192xf32>
    %9 = arith.addf %3, %8 : vector<16x192xf32>
    %c0_6 = arith.constant 0 : index
    %c0_7 = arith.constant 0 : index
    %10 = vector.load %arg7[%c0_6, %c0_7] : memref<16x192xf32, #tpu.memory_space<vmem>>, vector<16x192xf32>
    tpu.vector_store %arg7[%c0_6, %c0_7], %9 {strides = array<i32>} : memref<16x192xf32, #tpu.memory_space<vmem>>, vector<16x192xf32>,
    %c0_i32_8 = arith.constant 0 : i32
    %11 = arith.cmpi eq, %arg2, %c0_i32_8 : i32
    %12 = arith.extui %11 : i1 to i32
    %c0_i32_9 = arith.constant 0 : i32
    %13 = arith.cmpi ne, %12, %c0_i32_9 : i32
    scf.if %13 {
      %c0_10 = arith.constant 0 : index
      %c0_11 = arith.constant 0 : index
      %14 = vector.load %arg7[%c0_10, %c0_11] : memref<16x192xf32, #tpu.memory_space<vmem>>, vector<16x192xf32>
      %c0_12 = arith.constant 0 : index
      %c0_13 = arith.constant 0 : index
      %15 = vector.load %arg5[%c0_12, %c0_13] : memref<1x192xf32, #tpu.memory_space<vmem>>, vector<1x192xf32>
      %16 = vector.broadcast %15 : vector<1x192xf32> to vector<16x192xf32>
      %17 = arith.addf %14, %16 : vector<16x192xf32>
      %c0_14 = arith.constant 0 : index
      %c0_15 = arith.constant 0 : index
      %18 = vector.load %arg6[%c0_14, %c0_15] : memref<16x192xf32, #tpu.memory_space<vmem>>, vector<16x192xf32>
      tpu.vector_store %arg6[%c0_14, %c0_15], %17 {strides = array<i32>} : memref<16x192xf32, #tpu.memory_space<vmem>>, vector<16x192xf32>,
    } else {
    }
    return
  }
  func.func @transform_0(%arg0: i32, %arg1: i32, %arg2: i32) -> (i32, i32) {
    %c0_i32 = arith.constant 0 : i32
    return %arg0, %arg2 : i32, i32
  }
  func.func @transform_1(%arg0: i32, %arg1: i32, %arg2: i32) -> (i32, i32) {
    %c0_i32 = arith.constant 0 : i32
    return %arg2, %arg1 : i32, i32
  }
  func.func @transform_2(%arg0: i32, %arg1: i32, %arg2: i32) -> (i32, i32) {
    %c0_i32 = arith.constant 0 : i32
    %c0_i32_0 = arith.constant 0 : i32
    return %c0_i32, %arg1 : i32, i32
  }
  func.func @transform_3(%arg0: i32, %arg1: i32, %arg2: i32) -> (i32, i32) {
    %c0_i32 = arith.constant 0 : i32
    return %arg0, %arg1 : i32, i32
  }
}

</mosaic_0001>

<llo_original>
// kernel: tpu_custom_call.1
$region0: #{tpu_custom_call.1}
  #allocation0 [shape = 'u32[]', space=smem, size = 0x4, offset = 0x4, fixed_abs, tag = 'smem constant byte address 0x4 - core index']
  #allocation1 [shape = 'u32[72,128]{1,0:T(1,128)}', space=vmem, size = 0x9000, scoped, tag = 'internal scratch']
  #allocation2 [shape = 'f32[16,192]{1,0:T(8,128)}', space=vmem, size = 0x4000, scoped, tag = 'scratch operand']
  %s0 = inlined_call_operand.hbm [shape: f32[16,32], index: 0, kind: input, shape index: {}]
  %s1 = inlined_call_operand.hbm [shape: f32[32,192], index: 1, kind: input, shape index: {}]
  %s2 = inlined_call_operand.hbm [shape: f32[1,192], index: 2, kind: input, shape index: {}]
  %s3 = inlined_call_operand.hbm [shape: f32[16,192], index: 3, kind: output, shape index: {}]
  %s4 = sld [smem:[#allocation0]]
  $region42: #{tpu_custom_call.1} parent=0
    _
  %s6 = ssub.s32 1, %s4
  %s7 = scalar_select 0, %s6, %s4
  $region1: #{tpu_custom_call.1} parent=0
    #allocation3 [shape = 'u8[8192]{0}', space=vmem, size = 0x2000, scoped, tag = 'input window, operand 0, single buffered']
    #allocation4 [shape = 's32[1]{0}', space=sflag, size = 0x4, scoped, tag = 'scoped memory for tpu_custom_call.1']
    #allocation5 [shape = 's32[1]{0}', space=sflag, size = 0x4, scoped, tag = 'scoped memory for tpu_custom_call.1']
    #allocation6 [shape = 'u8[32768]{0}', space=vmem, size = 0x8000, scoped, tag = 'input window, operand 1, single buffered']
    #allocation7 [shape = 's32[1]{0}', space=sflag, size = 0x4, scoped, tag = 'scoped memory for tpu_custom_call.1']
    #allocation8 [shape = 'u8[1024]{0}', space=vmem, size = 0x400, scoped, tag = 'input window, operand 2, single buffered']
    #allocation9 [shape = 'u8[16384]{0}', space=vmem, size = 0x4000, scoped, tag = 'output window, operand 0, single buffered']
    %8 = vsyncpa [#allocation4], 0
    %9 = vsyncpa [#allocation7], 0
    %10 = vsyncpa [#allocation5], 0
    // Predicated region
    $region2: #{tpu_custom_call.1} parent=1 // pred_check
      _
    $region3: #{tpu_custom_call.1} parent=1 // pred_check_branch
      %12 = sbr.rel (0) target = $region5
    $region4: #{tpu_custom_call.1} parent=1 // pred_region
      %14 = vsyncadd [#allocation4], 0
      %s15 = sshll.u32 %s0, 4
      %s16 = int_to_ptr.hbm [resolvable:$true] %s15
      %s17 = sshll.u32 [#allocation3], 4
      %s18 = int_to_ptr.vmem [resolvable:$true] %s17
      %23 = dma.hbm_to_vmem [thread:$0]  %s16, 256, %s18, [#allocation4], 128, 128, 8
    $region5: #{tpu_custom_call.1} parent=1 // pred_fallthru
      _
    // Predicated region
    $region6: #{tpu_custom_call.1} parent=1 // pred_check
      _
    $region7: #{tpu_custom_call.1} parent=1 // pred_check_branch
      %25 = sbr.rel (0) target = $region9
    $region8: #{tpu_custom_call.1} parent=1 // pred_region
      %27 = vsyncadd [#allocation7], 0
      %s28 = sshll.u32 %s1, 4
      %s29 = int_to_ptr.hbm [resolvable:$true] %s28
      %s30 = sshll.u32 [#allocation6], 4
      %s31 = int_to_ptr.vmem [resolvable:$true] %s30
      %36 = dma.hbm_to_vmem [thread:$0]  %s29, 1024, %s31, [#allocation7], 256, 256, 16
    $region9: #{tpu_custom_call.1} parent=1 // pred_fallthru
      _
    // Predicated region
    $region10: #{tpu_custom_call.1} parent=1 // pred_check
      _
    $region11: #{tpu_custom_call.1} parent=1 // pred_check_branch
      %38 = sbr.rel (0) target = $region13
    $region12: #{tpu_custom_call.1} parent=1 // pred_region
      %40 = vsyncadd [#allocation7], 0
      %s42 = sshll.u32 %s2, 4
      %s43 = int_to_ptr.hbm [resolvable:$true] %s42
      %s44 = sshll.u32 [#allocation8], 4
      %s45 = int_to_ptr.vmem [resolvable:$true] %s44
      %47 = dma.hbm_to_vmem [thread:$0]  %s43, 32, %s45, [#allocation7]
    $region13: #{tpu_custom_call.1} parent=1 // pred_fallthru
      _
    // Predicated region
    $region14: #{tpu_custom_call.1} parent=1 // pred_check
      _
    $region15: #{tpu_custom_call.1} parent=1 // pred_check_branch
      %49 = sbr.rel (0) target = $region17
    $region16: #{tpu_custom_call.1} parent=1 // pred_region
      %51 = dma.done [#allocation4], 256
    $region17: #{tpu_custom_call.1} parent=1 // pred_fallthru
      _
    // Predicated region
    $region18: #{tpu_custom_call.1} parent=1 // pred_check
      _
    $region19: #{tpu_custom_call.1} parent=1 // pred_check_branch
      %53 = sbr.rel (0) target = $region21
    $region20: #{tpu_custom_call.1} parent=1 // pred_region
      %55 = dma.done [#allocation7], 1024
    $region21: #{tpu_custom_call.1} parent=1 // pred_fallthru
      _
    // Predicated region
    $region22: #{tpu_custom_call.1} parent=1 // pred_check
      _
    $region23: #{tpu_custom_call.1} parent=1 // pred_check_branch
      %57 = sbr.rel (0) target = $region25
    $region24: #{tpu_custom_call.1} parent=1 // pred_region
      %59 = dma.done [#allocation7], 32
    $region25: #{tpu_custom_call.1} parent=1 // pred_fallthru
      _
    %p61 = scmp.eq.s32.totalorder 0, 0
    // Predicated region
    $region26: #{tpu_custom_call.1} parent=1 // pred_check
      %p62 = pneg %p61
    $region27: #{tpu_custom_call.1} parent=1 // pred_check_branch
      %64 = sbr.rel (%p62) target = $region29
    $region28: #{tpu_custom_call.1} parent=1 // pred_region
      %65 = vst [vmem:[#allocation2] sm:$0xff] 0.0
      %vm66 = vcmask 523264
      %67 = vst.msk [vmem:[#allocation2 + $0x8] sm:$0xff] %vm66, 0.0
      %68 = vst [vmem:[#allocation2 + $0x10] sm:$0xff] 0.0
      %69 = vst.msk [vmem:[#allocation2 + $0x18] sm:$0xff] %vm66, 0.0
    $region29: #{tpu_custom_call.1} parent=1 // pred_fallthru
      _
    %v70 = vld [vmem:[#allocation2] sm:$0xff]
    %v71 = vld [vmem:[#allocation2 + $0x8] sm:$0xff]
    %v72 = vld [vmem:[#allocation2 + $0x10] sm:$0xff]
    %v73 = vld [vmem:[#allocation2 + $0x18] sm:$0xff]
    %v74 = vld [vmem:[#allocation3] sm:$0xff]
    %v75 = vld [vmem:[#allocation3 + $0x8] sm:$0xff]
    %v76 = vpack.c.bf16 %v75, %v74
    %v77 = vld [vmem:[#allocation6] sm:$0xff]
    %v78 = vld [vmem:[#allocation6 + $0x8] sm:$0xff]
    %v79 = vld [vmem:[#allocation6 + $0x10] sm:$0xff]
    %v80 = vld [vmem:[#allocation6 + $0x18] sm:$0xff]
    %v81 = vld [vmem:[#allocation6 + $0x20] sm:$0xff]
    %v82 = vld [vmem:[#allocation6 + $0x28] sm:$0xff]
    %v83 = vld [vmem:[#allocation6 + $0x30] sm:$0xff]
    %v84 = vld [vmem:[#allocation6 + $0x38] sm:$0xff]
    %v85 = vpack.c.bf16 %v79, %v77
    %v86 = vpack.c.bf16 %v80, %v78
    %v87 = vpack.c.bf16 %v83, %v81
    %v88 = vpack.c.bf16 %v84, %v82
    %vm89 = vcmask 261120
    %v91 = vsel %vm89, %v76, 0
    %93 = vmatpush.bf16.msra.mxu0 0
    %94 = vmatpush.bf16.msra.mxu0 0
    %95 = vmatpush.bf16.msra.mxu0 0
    %96 = vmatpush.bf16.msra.mxu0 0
    %97 = vmatpush.bf16.msra.mxu0 0
    %98 = vmatpush.bf16.msra.mxu0 0
    %99 = vmatpush.bf16.msra.mxu0 %v87
    %100 = vmatpush.bf16.msra.mxu0 %v85
    %101 = vmatmul.bf16.gmra.mxu0 %v91
    %v102 = vpop.f32.mrf.mxu0
    %v103 = vadd.f32 0.0, %v102
    %v104 = vpop.f32.mrf.mxu0
    %v105 = vadd.f32 0.0, %v104
    %106 = vdwg.mxu0
    %107 = vmatpush.bf16.msra.mxu0 0
    %108 = vmatpush.bf16.msra.mxu0 0
    %109 = vmatpush.bf16.msra.mxu0 0
    %110 = vmatpush.bf16.msra.mxu0 0
    %111 = vmatpush.bf16.msra.mxu0 0
    %112 = vmatpush.bf16.msra.mxu0 0
    %113 = vmatpush.bf16.msra.mxu0 %v88
    %114 = vmatpush.bf16.msra.mxu0 %v86
    %115 = vmatmul.bf16.gmra.mxu0 %v91
    %v116 = vpop.f32.mrf.mxu0
    %v117 = vadd.f32 0.0, %v116
    %v118 = vpop.f32.mrf.mxu0
    %v119 = vadd.f32 0.0, %v118
    %120 = vdwg.mxu0
    %v121 = vadd.f32 %v70, %v103
    %v122 = vadd.f32 %v71, %v117
    %v123 = vadd.f32 %v72, %v105
    %v124 = vadd.f32 %v73, %v119
    %125 = vst [vmem:[#allocation2] sm:$0xff] %v121
    %vm126 = vcmask 523264
    %127 = vst.msk [vmem:[#allocation2 + $0x8] sm:$0xff] %vm126, %v122
    %128 = vst [vmem:[#allocation2 + $0x10] sm:$0xff] %v123
    %129 = vst.msk [vmem:[#allocation2 + $0x18] sm:$0xff] %vm126, %v124
    // Predicated region
    $region30: #{tpu_custom_call.1} parent=1 // pred_check
      %p130 = pneg %p61
    $region31: #{tpu_custom_call.1} parent=1 // pred_check_branch
      %132 = sbr.rel (%p130) target = $region33
    $region32: #{tpu_custom_call.1} parent=1 // pred_region
      %v133 = vld [vmem:[#allocation2] sm:$0xff]
      %v134 = vld [vmem:[#allocation2 + $0x8] sm:$0xff]
      %v135 = vld [vmem:[#allocation2 + $0x10] sm:$0xff]
      %v136 = vld [vmem:[#allocation2 + $0x18] sm:$0xff]
      %v137 = vld [vmem:[#allocation8] sm:$0x3]
      %v139 = vperm.slane %v137, 0
      %v140 = vperm.slane %v137, 1
      %v143 = vadd.f32 %v133, %v139
      %v144 = vadd.f32 %v134, %v140
      %v145 = vadd.f32 %v135, %v139
      %v146 = vadd.f32 %v136, %v140
      %147 = vst [vmem:[#allocation9] sm:$0xff] %v143
      %148 = vst.msk [vmem:[#allocation9 + $0x8] sm:$0xff] %vm126, %v144
      %149 = vst [vmem:[#allocation9 + $0x10] sm:$0xff] %v145
      %150 = vst.msk [vmem:[#allocation9 + $0x18] sm:$0xff] %vm126, %v146
    $region33: #{tpu_custom_call.1} parent=1 // pred_fallthru
      _
    // Predicated region
    $region34: #{tpu_custom_call.1} parent=1 // pred_check
      _
    $region35: #{tpu_custom_call.1} parent=1 // pred_check_branch
      %152 = sbr.rel (0) target = $region37
    $region36: #{tpu_custom_call.1} parent=1 // pred_region
      %154 = vsyncadd [#allocation5], 0
      %s155 = sshll.u32 [#allocation9], 4
      %s156 = int_to_ptr.vmem [resolvable:$true] %s155
      %s157 = sshll.u32 %s3, 4
      %s158 = int_to_ptr.hbm [resolvable:$true] %s157
      %163 = dma.vmem_to_hbm [thread:$0]  %s156, 512, %s158, [#allocation5], 256, 256, 16
    $region37: #{tpu_custom_call.1} parent=1 // pred_fallthru
      _
    // Predicated region
    $region38: #{tpu_custom_call.1} parent=1 // pred_check
      _
    $region39: #{tpu_custom_call.1} parent=1 // pred_check_branch
      %165 = sbr.rel (0) target = $region41
    $region40: #{tpu_custom_call.1} parent=1 // pred_region
      %167 = dma.done [#allocation5], 512
    $region41: #{tpu_custom_call.1} parent=1 // pred_fallthru
      _
    %168 = vsyncpa [#allocation4], 1
    %169 = vsyncpa [#allocation7], 1
    %170 = vsyncpa [#allocation5], 1

</llo_original>
